<compile_context>
chip_gen: v7x
topology: tpu7x:2x2x1
jax: 0.10.0
libtpu: 0.0.40
codegen_flags: <defaults>
</compile_context>

<pallas_src>
import functools
import math

import jax
import jax.numpy as jnp
import numpy as np
from jax.experimental import pallas as pl
from jax.experimental.pallas import tpu as pltpu


def _make_kernel(write_att, use_bf16_matmul):
    """Build the chunked StructuredAttention kernel body."""

    def _mm(a, b, dims):
        # MXU matmul helper: optional bf16 operands, f32 accumulation.
        if use_bf16_matmul:
            a = a.astype(jnp.bfloat16)
            b = b.astype(jnp.bfloat16)
        return jax.lax.dot_general(a, b, dimension_numbers=dims,
                                   preferred_element_type=jnp.float32)

    def kernel(q_ref, k_ref, v_ref, wt_ref, mask_ref, *out_refs):
        # q_ref: (Bt, Lq, Dq), k_ref: (Bt, Lk, Dk), v_ref: (Bt, Lk, Dv)
        # wt_ref: (Dk, Dq), mask_ref: (Bt, 1, Lk)
        if write_att:
            out_ref, att_ref, pnsq_ref = out_refs
        else:
            out_ref, pnsq_ref = out_refs

        bt, lk, dk = k_ref.shape
        lq = q_ref.shape[1]
        dq = wt_ref.shape[1]
        inv_sqrt_dk = jnp.float32(float(dk) ** -0.5)

        # --- wk = tanh(k @ Wt) for the whole chunk -------------------------
        k_val = k_ref[...]
        wt = wt_ref[...]
        if lk % 8 == 0:
            # Collapse (Bt, Lk) into one row axis -> single big MXU pass.
            wk = jnp.tanh(
                _mm(k_val.reshape(bt * lk, dk), wt, (((1,), (0,)), ((), ())))
            ).reshape(bt, lk, dq)
        else:
            # Fallback: batched matmul with a (cheap, hoisted) broadcast of Wt.
            wt_b = jnp.broadcast_to(wt, (bt, dk, dq))
            wk = jnp.tanh(_mm(k_val, wt_b, (((2,), (1,)), ((0,), (0,)))))

        # --- score[b] = q[b] @ wk[b]^T (contraction on last dims) ----------
        q_val = q_ref[...]
        if dq <= lk:
            # Scale the smaller tensor (Lq*Dq elements) before the matmul.
            q_val = q_val * inv_sqrt_dk
        score = _mm(q_val, wk, (((2,), (2,)), ((0,), (0,))))   # (Bt, Lq, Lk)
        if dq > lk:
            score = score * inv_sqrt_dk

        # masked_fill_(mask == 0, -1e9); mask (Bt,1,Lk) broadcasts over Lq.
        score = jnp.where(mask_ref[...] == 0,
                          jnp.float32(-1000000000.0), score)

        # --- softmax over keys (reciprocal on the EUP slot) -----------------
        m = jnp.max(score, axis=-1, keepdims=True)
        e = jnp.exp(score - m)
        s = jnp.sum(e, axis=-1, keepdims=True)
        att = e * pl.reciprocal(s, approx=False)
        if write_att:
            att_ref[...] = att

        # --- out[b] = att[b] @ v[b] -----------------------------------------
        out_ref[...] = _mm(att, v_ref[...],
                           (((2,), (1,)), ((0,), (0,)))).astype(out_ref.dtype)

        # --- penalty: ||A A^T - I||_F^2 = sum(aat^2) - 2*sum(att^2) + Lq ----
        aat = _mm(att, att, (((2,), (2,)), ((0,), (0,))))       # (Bt, Lq, Lq)
        sum_aat2 = jnp.sum(jnp.sum(aat * aat, axis=-1, keepdims=True),
                           axis=-2, keepdims=True)              # (Bt, 1, 1)
        sum_att2 = jnp.sum(jnp.sum(att * att, axis=-1, keepdims=True),
                           axis=-2, keepdims=True)              # (Bt, 1, 1)
        pnsq_ref[...] = sum_aat2 - 2.0 * sum_att2 + jnp.float32(lq)

    return kernel


def _choose_batch_tile(B, Lq):
    """Largest divisor of B with Bt*Lq close to (<=) ~128 MXU rows."""
    target = max(1, -(-128 // Lq))   # cdiv(128, Lq)
    bt = 1
    for d in range(1, B + 1):
        if B % d == 0 and d <= target:
            bt = d
    return bt


@functools.partial(jax.jit,
                   static_argnames=("penal_coeff", "return_att",
                                    "use_bf16_matmul"))
def structured_attention(q, k, v, k_length_index, wt, penal_coeff=0.5,
                         return_att=True, use_bf16_matmul=False):
    """Pallas-backed StructuredAttention forward (scaled_att=True, dropout=0).

    Returns (out, att_or_None, penal_term_or_None), mirroring the module.
    """
    B, Lq, Dq = q.shape
    _, Lk, Dk = k.shape
    Dv = v.shape[-1]

    Bt = _choose_batch_tile(B, Lq)
    num_chunks = B // Bt
    # TODO(synk): for very long Lq/Lk add an Lk-tiled online-softmax variant
    # (and re-derive tiling for v7x's 64 MiB VMEM); not needed at these sizes.

    # mask shaped (B, 1, Lk) so it rides in the same batch-chunked block.
    mask = k_length_index.reshape(B, 1, Lk).astype(jnp.int32)

    kernel = _make_kernel(return_att, use_bf16_matmul)

    out_shapes = [jax.ShapeDtypeStruct((B, Lq, Dv), jnp.float32)]
    out_specs = [pl.BlockSpec((Bt, Lq, Dv), lambda b: (b, 0, 0))]
    if return_att:
        out_shapes.append(jax.ShapeDtypeStruct((B, Lq, Lk), jnp.float32))
        out_specs.append(pl.BlockSpec((Bt, Lq, Lk), lambda b: (b, 0, 0)))
    # per-batch pnorm^2, written once per chunk (sqrt + mean done in JAX).
    out_shapes.append(jax.ShapeDtypeStruct((B, 1, 1), jnp.float32))
    out_specs.append(pl.BlockSpec((Bt, 1, 1), lambda b: (b, 0, 0)))

    results = pl.pallas_call(
        kernel,
        out_shape=tuple(out_shapes),
        grid=(num_chunks,),
        in_specs=[
            pl.BlockSpec((Bt, Lq, Dq), lambda b: (b, 0, 0)),   # q
            pl.BlockSpec((Bt, Lk, Dk), lambda b: (b, 0, 0)),   # k
            pl.BlockSpec((Bt, Lk, Dv), lambda b: (b, 0, 0)),   # v
            pl.BlockSpec((Dk, Dq), lambda b: (0, 0)),          # Wt (resident)
            pl.BlockSpec((Bt, 1, Lk), lambda b: (b, 0, 0)),    # mask
        ],
        out_specs=tuple(out_specs),
        compiler_params=pltpu.CompilerParams(
            dimension_semantics=("parallel",)),
    )(q, k, v, wt, mask)

    if return_att:
        out, att, pn_sq = results
    else:
        out, pn_sq = results
        att = None

    penal_term = None
    if penal_coeff > 0.0:
        pnorm = jnp.sqrt(jnp.maximum(pn_sq.reshape(B), 0.0))
        penal_term = jnp.mean(pnorm) * penal_coeff
    return out, att, penal_term


def reference(q, k, v, k_length_index, W, penal_coeff):
    """Plain-JAX reference mirroring the PyTorch forward."""
    wk = jnp.tanh(jnp.einsum('bkd,od->bko', k, W))            # w(k)
    score = jnp.einsum('bqd,bkd->bqk', q, wk)
    score = score * (k.shape[-1] ** -0.5)
    score = jnp.where(k_length_index[:, None, :] == 0, -1000000000.0, score)
    att = jax.nn.softmax(score, axis=-1)
    out = jnp.einsum('bqk,bkd->bqd', att, v)
    I = jnp.eye(q.shape[1], dtype=jnp.float32)
    aat = jnp.einsum('bqk,bpk->bqp', att, att)
    p = jnp.sqrt(jnp.sum((aat - I) ** 2, axis=(1, 2))).mean() * penal_coeff
    return out, att, p


if __name__ == "__main__":
    # Small shapes consistent with the module: batched seqs, feature-last.
    B, Lq, Lk = 2, 8, 16
    q_dim, k_dim, v_dim = 32, 32, 32
    penal_coeff = 0.5

    key = jax.random.PRNGKey(0)
    kq, kk, kv, kw = jax.random.split(key, 4)

    q = jax.random.normal(kq, (B, Lq, q_dim), dtype=jnp.float32)
    k = jax.random.normal(kk, (B, Lk, k_dim), dtype=jnp.float32)
    v = jax.random.normal(kv, (B, Lk, v_dim), dtype=jnp.float32)

    # k_length_index: 1 for valid positions, 0 for padding (batch 1 padded).
    lens = jnp.array([Lk, Lk - 5], dtype=jnp.int32)
    k_length_index = (jnp.arange(Lk)[None, :] < lens[:, None]).astype(jnp.int32)

    # Xavier-uniform init (gain=1) of nn.Linear(k_dim, q_dim, bias=False):
    # weight shape (q_dim, k_dim); bound = sqrt(6 / (fan_in + fan_out)).
    bound = math.sqrt(6.0 / (q_dim + k_dim))
    W = jax.random.uniform(kw, (q_dim, k_dim), dtype=jnp.float32,
                           minval=-bound, maxval=bound)
    Wt = W.T  # (k_dim, q_dim), so k @ Wt == Linear(k)

    out, att, penal = structured_attention(q, k, v, k_length_index, Wt,
                                           penal_coeff=penal_coeff)
    jax.block_until_ready((out, att, penal))

    out_ref, att_ref, penal_ref = reference(q, k, v, k_length_index, W,
                                            penal_coeff)

    np.testing.assert_allclose(np.asarray(out), np.asarray(out_ref),
                               rtol=1e-4, atol=1e-5)
    np.testing.assert_allclose(np.asarray(att), np.asarray(att_ref),
                               rtol=1e-4, atol=1e-5)
    np.testing.assert_allclose(float(penal), float(penal_ref),
                               rtol=1e-4, atol=1e-5)

    # Also exercise the att-elided fast path (skips the largest HBM writeback).
    out2, _, penal2 = structured_attention(q, k, v, k_length_index, Wt,
                                           penal_coeff=penal_coeff,
                                           return_att=False)
    jax.block_until_ready((out2, penal2))
    np.testing.assert_allclose(np.asarray(out2), np.asarray(out_ref),
                               rtol=1e-4, atol=1e-5)
    np.testing.assert_allclose(float(penal2), float(penal_ref),
                               rtol=1e-4, atol=1e-5)

    print("KERNEL_OK")
</pallas_src>

<mosaic_0001>
module attributes {stable_mosaic.version = 11 : i64} {
  func.func @kernel(%arg0: i32, %arg1: memref<2x8x32xf32, #tpu.memory_space<vmem>>, %arg2: memref<2x16x32xf32, #tpu.memory_space<vmem>>, %arg3: memref<2x16x32xf32, #tpu.memory_space<vmem>>, %arg4: memref<32x32xf32, #tpu.memory_space<vmem>>, %arg5: memref<2x1x16xi32, #tpu.memory_space<vmem>>, %arg6: memref<2x8x32xf32, #tpu.memory_space<vmem>>, %arg7: memref<2x8x16xf32, #tpu.memory_space<vmem>>, %arg8: memref<2x1x1xf32, #tpu.memory_space<vmem>>) attributes {dimension_semantics = [#tpu.dimension_semantics<parallel>], iteration_bounds = array<i64: 1>, scalar_prefetch = 0 : i64, scratch_operands = 0 : i64, tpu.core_type = #tpu.core_type<tc>, window_params = [{transform_indices = @transform_0, window_bounds = array<i64: 2, 8, 32>}, {transform_indices = @transform_1, window_bounds = array<i64: 2, 16, 32>}, {transform_indices = @transform_2, window_bounds = array<i64: 2, 16, 32>}, {pipeline_mode = #tpu.pipeline_mode<synchronous>, transform_indices = @transform_3, window_bounds = array<i64: 32, 32>}, {transform_indices = @transform_4, window_bounds = array<i64: 2, 1, 16>}, {transform_indices = @transform_5, window_bounds = array<i64: 2, 8, 32>}, {transform_indices = @transform_6, window_bounds = array<i64: 2, 8, 16>}, {transform_indices = @transform_7, window_bounds = array<i64: 2, 1, 1>}]} {
    %c0 = arith.constant 0 : index
    %c0_0 = arith.constant 0 : index
    %c0_1 = arith.constant 0 : index
    %0 = vector.load %arg2[%c0, %c0_0, %c0_1] : memref<2x16x32xf32, #tpu.memory_space<vmem>>, vector<2x16x32xf32>
    %c0_2 = arith.constant 0 : index
    %c0_3 = arith.constant 0 : index
    %1 = vector.load %arg4[%c0_2, %c0_3] : memref<32x32xf32, #tpu.memory_space<vmem>>, vector<32x32xf32>
    %2 = vector.shape_cast %0 : vector<2x16x32xf32> to vector<32x32xf32>
    %cst = arith.constant dense<0.000000e+00> : vector<32x32xf32>
    %3 = tpu.matmul %2, %1, %cst {dimension_numbers = #tpu.dot_dimension_numbers<[1], [0], [0], [1], [0, 0, 1, 1], [], []>} : vector<32x32xf32>, vector<32x32xf32>, vector<32x32xf32> -> vector<32x32xf32>
    %4 = math.tanh %3 : vector<32x32xf32>
    %5 = vector.shape_cast %4 : vector<32x32xf32> to vector<2x16x32xf32>
    %c0_4 = arith.constant 0 : index
    %c0_5 = arith.constant 0 : index
    %c0_6 = arith.constant 0 : index
    %6 = vector.load %arg1[%c0_4, %c0_5, %c0_6] : memref<2x8x32xf32, #tpu.memory_space<vmem>>, vector<2x8x32xf32>
    %cst_7 = arith.constant dense<0.000000e+00> : vector<2x8x16xf32>
    %7 = tpu.matmul %6, %5, %cst_7 {dimension_numbers = #tpu.dot_dimension_numbers<[2], [2], [1], [1], [0, 0, 0, 1, 1, 1], [0], [0]>} : vector<2x8x32xf32>, vector<2x16x32xf32>, vector<2x8x16xf32> -> vector<2x8x16xf32>
    %cst_8 = arith.constant 0.176776692 : f32
    %8 = vector.broadcast %cst_8 : f32 to vector<2x8x16xf32>
    %9 = arith.mulf %7, %8 : vector<2x8x16xf32>
    %c0_9 = arith.constant 0 : index
    %c0_10 = arith.constant 0 : index
    %c0_11 = arith.constant 0 : index
    %10 = vector.load %arg5[%c0_9, %c0_10, %c0_11] : memref<2x1x16xi32, #tpu.memory_space<vmem>>, vector<2x1x16xi32>
    %c0_i32 = arith.constant 0 : i32
    %11 = vector.broadcast %c0_i32 : i32 to vector<2x1x16xi32>
    %12 = arith.cmpi eq, %10, %11 : vector<2x1x16xi32>
    %cst_12 = arith.constant -1.000000e+09 : f32
    %13 = vector.shape_cast %12 : vector<2x1x16xi1> to vector<2x1x16xi1>
    %14 = vector.broadcast %13 : vector<2x1x16xi1> to vector<2x8x16xi1>
    %15 = vector.broadcast %cst_12 : f32 to vector<2x8x16xf32>
    %16 = arith.select %14, %15, %9 : vector<2x8x16xi1>, vector<2x8x16xf32>
    %cst_13 = arith.constant dense<0xFF800000> : vector<2x8xf32>
    %17 = vector.multi_reduction <maximumf>, %16, %cst_13 [2] : vector<2x8x16xf32> to vector<2x8xf32>
    %18 = vector.shape_cast %17 : vector<2x8xf32> to vector<2x8x1xf32>
    %19 = vector.broadcast %18 : vector<2x8x1xf32> to vector<2x8x16xf32>
    %20 = arith.subf %16, %19 : vector<2x8x16xf32>
    %21 = math.exp %20 : vector<2x8x16xf32>
    %cst_14 = arith.constant dense<0.000000e+00> : vector<2x8xf32>
    %22 = vector.multi_reduction <add>, %21, %cst_14 [2] : vector<2x8x16xf32> to vector<2x8xf32>
    %23 = vector.shape_cast %22 : vector<2x8xf32> to vector<2x8x1xf32>
    %24 = tpu.reciprocal %23 : vector<2x8x1xf32> -> vector<2x8x1xf32>
    %25 = vector.broadcast %24 : vector<2x8x1xf32> to vector<2x8x16xf32>
    %26 = arith.mulf %21, %25 : vector<2x8x16xf32>
    %c0_15 = arith.constant 0 : index
    %c0_16 = arith.constant 0 : index
    %c0_17 = arith.constant 0 : index
    %27 = vector.load %arg7[%c0_15, %c0_16, %c0_17] : memref<2x8x16xf32, #tpu.memory_space<vmem>>, vector<2x8x16xf32>
    tpu.vector_store %arg7[%c0_15, %c0_16, %c0_17], %26 {strides = array<i32>} : memref<2x8x16xf32, #tpu.memory_space<vmem>>, vector<2x8x16xf32>,
    %c0_18 = arith.constant 0 : index
    %c0_19 = arith.constant 0 : index
    %c0_20 = arith.constant 0 : index
    %28 = vector.load %arg3[%c0_18, %c0_19, %c0_20] : memref<2x16x32xf32, #tpu.memory_space<vmem>>, vector<2x16x32xf32>
    %cst_21 = arith.constant dense<0.000000e+00> : vector<2x8x32xf32>
    %29 = tpu.matmul %26, %28, %cst_21 {dimension_numbers = #tpu.dot_dimension_numbers<[2], [1], [1], [2], [0, 0, 0, 1, 1, 2], [0], [0]>} : vector<2x8x16xf32>, vector<2x16x32xf32>, vector<2x8x32xf32> -> vector<2x8x32xf32>
    %c0_22 = arith.constant 0 : index
    %c0_23 = arith.constant 0 : index
    %c0_24 = arith.constant 0 : index
    %30 = vector.load %arg6[%c0_22, %c0_23, %c0_24] : memref<2x8x32xf32, #tpu.memory_space<vmem>>, vector<2x8x32xf32>
    tpu.vector_store %arg6[%c0_22, %c0_23, %c0_24], %29 {strides = array<i32>} : memref<2x8x32xf32, #tpu.memory_space<vmem>>, vector<2x8x32xf32>,
    %cst_25 = arith.constant dense<0.000000e+00> : vector<2x8x8xf32>
    %31 = tpu.matmul %26, %26, %cst_25 {dimension_numbers = #tpu.dot_dimension_numbers<[2], [2], [1], [1], [0, 0, 0, 1, 1, 1], [0], [0]>} : vector<2x8x16xf32>, vector<2x8x16xf32>, vector<2x8x8xf32> -> vector<2x8x8xf32>
    %32 = arith.mulf %31, %31 : vector<2x8x8xf32>
    %cst_26 = arith.constant dense<0.000000e+00> : vector<2x8xf32>
    %33 = vector.multi_reduction <add>, %32, %cst_26 [2] : vector<2x8x8xf32> to vector<2x8xf32>
    %34 = vector.shape_cast %33 : vector<2x8xf32> to vector<2x8x1xf32>
    %cst_27 = arith.constant dense<0.000000e+00> : vector<2x1xf32>
    %35 = vector.multi_reduction <add>, %34, %cst_27 [1] : vector<2x8x1xf32> to vector<2x1xf32>
    %36 = vector.shape_cast %35 : vector<2x1xf32> to vector<2x1x1xf32>
    %37 = arith.mulf %26, %26 : vector<2x8x16xf32>
    %cst_28 = arith.constant dense<0.000000e+00> : vector<2x8xf32>
    %38 = vector.multi_reduction <add>, %37, %cst_28 [2] : vector<2x8x16xf32> to vector<2x8xf32>
    %39 = vector.shape_cast %38 : vector<2x8xf32> to vector<2x8x1xf32>
    %cst_29 = arith.constant dense<0.000000e+00> : vector<2x1xf32>
    %40 = vector.multi_reduction <add>, %39, %cst_29 [1] : vector<2x8x1xf32> to vector<2x1xf32>
    %41 = vector.shape_cast %40 : vector<2x1xf32> to vector<2x1x1xf32>
    %cst_30 = arith.constant 2.000000e+00 : f32
    %42 = vector.broadcast %cst_30 : f32 to vector<2x1x1xf32>
    %43 = arith.mulf %42, %41 : vector<2x1x1xf32>
    %44 = arith.subf %36, %43 : vector<2x1x1xf32>
    %cst_31 = arith.constant 8.000000e+00 : f32
    %45 = vector.broadcast %cst_31 : f32 to vector<2x1x1xf32>
    %46 = arith.addf %44, %45 : vector<2x1x1xf32>
    %c0_32 = arith.constant 0 : index
    %c0_33 = arith.constant 0 : index
    %c0_34 = arith.constant 0 : index
    %47 = vector.load %arg8[%c0_32, %c0_33, %c0_34] : memref<2x1x1xf32, #tpu.memory_space<vmem>>, vector<2x1x1xf32>
    tpu.vector_store %arg8[%c0_32, %c0_33, %c0_34], %46 {strides = array<i32>} : memref<2x1x1xf32, #tpu.memory_space<vmem>>, vector<2x1x1xf32>,
    return
  }
  func.func @transform_0(%arg0: i32) -> (i32, i32, i32) {
    %c0_i32 = arith.constant 0 : i32
    %c0_i32_0 = arith.constant 0 : i32
    %c0_i32_1 = arith.constant 0 : i32
    return %arg0, %c0_i32, %c0_i32_0 : i32, i32, i32
  }
  func.func @transform_1(%arg0: i32) -> (i32, i32, i32) {
    %c0_i32 = arith.constant 0 : i32
    %c0_i32_0 = arith.constant 0 : i32
    %c0_i32_1 = arith.constant 0 : i32
    return %arg0, %c0_i32, %c0_i32_0 : i32, i32, i32
  }
  func.func @transform_2(%arg0: i32) -> (i32, i32, i32) {
    %c0_i32 = arith.constant 0 : i32
    %c0_i32_0 = arith.constant 0 : i32
    %c0_i32_1 = arith.constant 0 : i32
    return %arg0, %c0_i32, %c0_i32_0 : i32, i32, i32
  }
  func.func @transform_3(%arg0: i32) -> (i32, i32) {
    %c0_i32 = arith.constant 0 : i32
    %c0_i32_0 = arith.constant 0 : i32
    %c0_i32_1 = arith.constant 0 : i32
    return %c0_i32, %c0_i32_0 : i32, i32
  }
  func.func @transform_4(%arg0: i32) -> (i32, i32, i32) {
    %c0_i32 = arith.constant 0 : i32
    %c0_i32_0 = arith.constant 0 : i32
    %c0_i32_1 = arith.constant 0 : i32
    return %arg0, %c0_i32, %c0_i32_0 : i32, i32, i32
  }
  func.func @transform_5(%arg0: i32) -> (i32, i32, i32) {
    %c0_i32 = arith.constant 0 : i32
    %c0_i32_0 = arith.constant 0 : i32
    %c0_i32_1 = arith.constant 0 : i32
    return %arg0, %c0_i32, %c0_i32_0 : i32, i32, i32
  }
  func.func @transform_6(%arg0: i32) -> (i32, i32, i32) {
    %c0_i32 = arith.constant 0 : i32
    %c0_i32_0 = arith.constant 0 : i32
    %c0_i32_1 = arith.constant 0 : i32
    return %arg0, %c0_i32, %c0_i32_0 : i32, i32, i32
  }
  func.func @transform_7(%arg0: i32) -> (i32, i32, i32) {
    %c0_i32 = arith.constant 0 : i32
    %c0_i32_0 = arith.constant 0 : i32
    %c0_i32_1 = arith.constant 0 : i32
    return %arg0, %c0_i32, %c0_i32_0 : i32, i32, i32
  }
}

</mosaic_0001>

<llo_original>
// kernel: structured_attention.1
$region0: #{structured_attention.1}
  #allocation0 [shape = 'u32[]', space=smem, size = 0x4, offset = 0x4, fixed_abs, tag = 'smem constant byte address 0x4 - core index']
  #allocation1 [shape = 'u32[144,128]{1,0:T(1,128)}', space=vmem, size = 0x12000, scoped, tag = 'internal scratch']
  %s0 = inlined_call_operand.vmem [shape: f32[2,8,32], index: 0, kind: input, shape index: {}]
  %s1 = inlined_call_operand.hbm [shape: f32[2,16,32], index: 1, kind: input, shape index: {}]
  %s2 = inlined_call_operand.hbm [shape: f32[2,16,32], index: 2, kind: input, shape index: {}]
  %s3 = inlined_call_operand.hbm [shape: f32[32,32], index: 3, kind: input, shape index: {}]
  %s4 = inlined_call_operand.vmem [shape: s32[2,1,16], index: 4, kind: input, shape index: {}]
  %s5 = inlined_call_operand.hbm [shape: f32[2,8,32], index: 5, kind: output, shape index: {0}]
  %s6 = inlined_call_operand.hbm [shape: f32[2,8,16], index: 6, kind: output, shape index: {1}]
  %s7 = inlined_call_operand.vmem [shape: f32[2,1,1], index: 7, kind: output, shape index: {2}]
  %8 = xla_tuple %s5, %s6, %s7
  %s9 = sld [smem:[#allocation0]]
  $region58: #{structured_attention.1} parent=0
    _
  %s11 = ssub.s32 1, %s9
  %s12 = scalar_select 0, %s11, %s9
  $region1: #{structured_attention.1} parent=0
    #allocation2 [shape = 'u8[16384]{0}', space=vmem, size = 0x4000, scoped, tag = 'input window, operand 1, single buffered']
    #allocation3 [shape = 's32[1]{0}', space=sflag, size = 0x4, scoped, tag = 'scoped memory for structured_attention.1']
    #allocation4 [shape = 's32[1]{0}', space=sflag, size = 0x4, scoped, tag = 'scoped memory for structured_attention.1']
    #allocation5 [shape = 'u8[16384]{0}', space=vmem, size = 0x4000, scoped, tag = 'input window, operand 2, single buffered']
    #allocation6 [shape = 's32[1]{0}', space=sflag, size = 0x4, scoped, tag = 'scoped memory for structured_attention.1']
    #allocation7 [shape = 'u8[16384]{0}', space=vmem, size = 0x4000, scoped, tag = 'input window, operand 3, single buffered']
    #allocation8 [shape = 'u8[8192]{0}', space=vmem, size = 0x2000, scoped, tag = 'output window, operand 0, single buffered']
    #allocation9 [shape = 'u8[8192]{0}', space=vmem, size = 0x2000, scoped, tag = 'output window, operand 1, single buffered']
    #allocation10 [shape = 's32[1]{0}', space=sflag, size = 0x4, scoped, tag = 'scoped memory for structured_attention.1']
    %13 = vsyncpa [#allocation3], 0
    %14 = vsyncpa [#allocation6], 0
    %15 = vsyncpa [#allocation4], 0
    %16 = vsyncpa [#allocation10], 0
    // Predicated region
    $region2: #{structured_attention.1} parent=1 // pred_check
      _
    $region3: #{structured_attention.1} parent=1 // pred_check_branch
      %18 = sbr.rel (0) target = $region5
    $region4: #{structured_attention.1} parent=1 // pred_region
      _
    $region5: #{structured_attention.1} parent=1 // pred_fallthru
      _
    // Predicated region
    $region6: #{structured_attention.1} parent=1 // pred_check
      _
    $region7: #{structured_attention.1} parent=1 // pred_check_branch
      %20 = sbr.rel (0) target = $region9
    $region8: #{structured_attention.1} parent=1 // pred_region
      %s22 = ssub.s32 512, 512
      %23 = vsyncadd [#allocation3], %s22
      %s24 = sshll.u32 [#allocation2], 4
      %s25 = int_to_ptr.vmem [resolvable:$true] %s24
      %30 = dma.hbm_to_vmem [thread:$0]  %s1, 512, %s25, [#allocation3], 128, 128, 8
    $region9: #{structured_attention.1} parent=1 // pred_fallthru
      _
    // Predicated region
    $region10: #{structured_attention.1} parent=1 // pred_check
      _
    $region11: #{structured_attention.1} parent=1 // pred_check_branch
      %32 = sbr.rel (0) target = $region13
    $region12: #{structured_attention.1} parent=1 // pred_region
      %s34 = ssub.s32 512, 512
      %35 = vsyncadd [#allocation6], %s34
      %s36 = sshll.u32 [#allocation5], 4
      %s37 = int_to_ptr.vmem [resolvable:$true] %s36
      %42 = dma.hbm_to_vmem [thread:$0]  %s2, 512, %s37, [#allocation6], 128, 128, 8
    $region13: #{structured_attention.1} parent=1 // pred_fallthru
      _
    // Predicated region
    $region14: #{structured_attention.1} parent=1 // pred_check
      _
    $region15: #{structured_attention.1} parent=1 // pred_check_branch
      %44 = sbr.rel (0) target = $region17
    $region16: #{structured_attention.1} parent=1 // pred_region
      %s46 = ssub.s32 512, 512
      %47 = vsyncadd [#allocation6], %s46
      %s48 = sshll.u32 [#allocation7], 4
      %s49 = int_to_ptr.vmem [resolvable:$true] %s48
      %54 = dma.hbm_to_vmem [thread:$0]  %s3, 512, %s49, [#allocation6], 128, 128, 8
    $region17: #{structured_attention.1} parent=1 // pred_fallthru
      _
    // Predicated region
    $region18: #{structured_attention.1} parent=1 // pred_check
      _
    $region19: #{structured_attention.1} parent=1 // pred_check_branch
      %56 = sbr.rel (0) target = $region21
    $region20: #{structured_attention.1} parent=1 // pred_region
      _
    $region21: #{structured_attention.1} parent=1 // pred_fallthru
      _
    // Predicated region
    $region22: #{structured_attention.1} parent=1 // pred_check
      _
    $region23: #{structured_attention.1} parent=1 // pred_check_branch
      %58 = sbr.rel (0) target = $region25
    $region24: #{structured_attention.1} parent=1 // pred_region
      %59 = dma.done [#allocation3], 512
    $region25: #{structured_attention.1} parent=1 // pred_fallthru
      _
    // Predicated region
    $region26: #{structured_attention.1} parent=1 // pred_check
      _
    $region27: #{structured_attention.1} parent=1 // pred_check_branch
      %61 = sbr.rel (0) target = $region29
    $region28: #{structured_attention.1} parent=1 // pred_region
      %62 = dma.done [#allocation6], 512
    $region29: #{structured_attention.1} parent=1 // pred_fallthru
      _
    // Predicated region
    $region30: #{structured_attention.1} parent=1 // pred_check
      _
    $region31: #{structured_attention.1} parent=1 // pred_check_branch
      %64 = sbr.rel (0) target = $region33
    $region32: #{structured_attention.1} parent=1 // pred_region
      %65 = dma.done [#allocation6], 512
    $region33: #{structured_attention.1} parent=1 // pred_fallthru
      _
    %v66 = vld [vmem:[#allocation2] sm:$0xff]
    %v67 = vld [vmem:[#allocation2 + $0x8] sm:$0xff]
    %v68 = vld [vmem:[#allocation2 + $0x10] sm:$0xff]
    %v69 = vld [vmem:[#allocation2 + $0x18] sm:$0xff]
    %v70 = vld [vmem:[#allocation7] sm:$0xff]
    %v71 = vld [vmem:[#allocation7 + $0x8] sm:$0xff]
    %v72 = vld [vmem:[#allocation7 + $0x10] sm:$0xff]
    %v73 = vld [vmem:[#allocation7 + $0x18] sm:$0xff]
    %vm74 = vcmask 261120
    %v76 = vsel %vm74, %v66, 0
    %v79 = vsel %vm74, %v67, 0
    %v82 = vsel %vm74, %v68, 0
    %v85 = vsel %vm74, %v69, 0
    %87 = vmatprep.subr.mxu0 0.0
    %88 = vmatpush1.msra.mxu0 %v70
    %89 = vmatprep.subr.mxu0 0.0
    %90 = vmatpush1.msra.mxu0 %v71
    %91 = vmatprep.subr.mxu0 0.0
    %92 = vmatpush1.msra.mxu0 %v72
    %93 = vmatprep.subr.mxu0 0.0
    %94 = vmatpush1.msra.mxu0 %v73
    %95 = vmatprep.subr.mxu0 0.0
    %96 = vmatpush1.msra.mxu0 0.0
    %97 = vmatprep.subr.mxu0 0.0
    %98 = vmatpush1.msra.mxu0 0.0
    %99 = vmatprep.subr.mxu0 0.0
    %100 = vmatpush1.msra.mxu0 0.0
    %101 = vmatprep.subr.mxu0 0.0
    %102 = vmatpush1.msra.mxu0 0.0
    %103 = vmatprep.subr.mxu0 0.0
    %104 = vmatpush1.msra.mxu0 0.0
    %105 = vmatprep.subr.mxu0 0.0
    %106 = vmatpush1.msra.mxu0 0.0
    %107 = vmatprep.subr.mxu0 0.0
    %108 = vmatpush1.msra.mxu0 0.0
    %109 = vmatprep.subr.mxu0 0.0
    %110 = vmatpush1.msra.mxu0 0.0
    %111 = vmatprep.subr.mxu0 0.0
    %112 = vmatpush1.msra.mxu0 0.0
    %113 = vmatprep.subr.mxu0 0.0
    %114 = vmatpush1.msra.mxu0 0.0
    %115 = vmatprep.subr.mxu0 0.0
    %116 = vmatpush1.msra.mxu0 0.0
    %117 = vmatprep.subr.mxu0 0.0
    %118 = vmatpush1.msra.mxu0 0.0
    %119 = vmatprep.subr.mxu0 0.0
    %120 = vmatpush1.msra.mxu0 0.0
    %121 = vmatprep.subr.mxu0 0.0
    %122 = vmatpush1.msra.mxu0 0.0
    %123 = vmatprep.subr.mxu0 0.0
    %124 = vmatpush1.msra.mxu0 0.0
    %125 = vmatprep.subr.mxu0 0.0
    %126 = vmatpush1.msra.mxu0 0.0
    %127 = vmatprep.subr.mxu0 0.0
    %128 = vmatpush1.msra.mxu0 0.0
    %129 = vmatprep.subr.mxu0 0.0
    %130 = vmatpush1.msra.mxu0 0.0
    %131 = vmatprep.subr.mxu0 0.0
    %132 = vmatpush1.msra.mxu0 0.0
    %133 = vmatprep.subr.mxu0 0.0
    %134 = vmatpush1.msra.mxu0 0.0
    %135 = vmatprep.subr.mxu0 0.0
    %136 = vmatpush1.msra.mxu0 0.0
    %137 = vmatprep.subr.mxu0 0.0
    %138 = vmatpush1.msra.mxu0 0.0
    %139 = vmatprep.subr.mxu0 0.0
    %140 = vmatpush1.msra.mxu0 0.0
    %141 = vmatprep.subr.mxu0 0.0
    %142 = vmatpush1.msra.mxu0 0.0
    %143 = vmatprep.subr.mxu0 0.0
    %144 = vmatpush1.msra.mxu0 0.0
    %145 = vmatprep.subr.mxu0 0.0
    %146 = vmatpush1.msra.mxu0 0.0
    %147 = vmatprep.subr.mxu0 0.0
    %148 = vmatpush1.msra.mxu0 0.0
    %149 = vmatprep.subr.mxu0 0.0
    %150 = vmatpush1.msra.mxu0 0.0
    %151 = vmatprep.mubr.f32.mxu0 0.0
    %152 = vmatmul.mubr.f32.gmra.mrb[0].mxu0 %v76
    %v153 = vpop.f32.mrb[0].mxu0
    %v154 = vadd.f32 0.0, %v153
    %v155 = vpop.f32.mrb[0].mxu0
    %156 = vmatprep.mubr.f32.mxu0 0.0
    %157 = vmatmul.mubr.f32.gmra.mrb[0].mxu0 %v79
    %v158 = vpop.f32.mrb[0].mxu0
    %v159 = vadd.f32 0.0, %v158
    %v160 = vpop.f32.mrb[0].mxu0
    %161 = vmatprep.mubr.f32.mxu0 0.0
    %162 = vmatmul.mubr.f32.gmra.mrb[0].mxu0 %v82
    %v163 = vpop.f32.mrb[0].mxu0
    %v164 = vadd.f32 0.0, %v163
    %v165 = vpop.f32.mrb[0].mxu0
    %166 = vmatprep.mubr.f32.mxu0 0.0
    %167 = vmatmul.mubr.f32.gmra.mrb[0].mxu0 %v85
    %v168 = vpop.f32.mrb[0].mxu0
    %v169 = vadd.f32 0.0, %v168
    %v170 = vpop.f32.mrb[0].mxu0
    %171 = vdwg.mxu0
    %v172 = vtanh.pop %v154
    %v173 = vtanh.pop %v159
    %v174 = vtanh.pop %v164
    %v175 = vtanh.pop %v169
    %v176 = vld [vmem:[%s0] sm:$0xff]
    %v177 = vld [vmem:[%s0 + $0x8] sm:$0xff]
    %v179 = vsel %vm74, %v176, 0
    %v182 = vsel %vm74, %v172, 0
    %v185 = vsel %vm74, %v173, 0
    %187 = vmatprep.subr.mxu0 0.0
    %188 = vmatpush1.xpose.msra.mxu0 %v182
    %189 = vmatprep.subr.mxu0 0.0
    %190 = vmatpush1.xpose.msra.mxu0 %v185
    %191 = vmatprep.subr.mxu0 0.0
    %192 = vmatpush1.xpose.msra.mxu0 0.0
    %193 = vmatprep.subr.mxu0 0.0
    %194 = vmatpush1.xpose.msra.mxu0 0.0
    %195 = vmatprep.subr.mxu0 0.0
    %196 = vmatpush1.xpose.msra.mxu0 0.0
    %197 = vmatprep.subr.mxu0 0.0
    %198 = vmatpush1.xpose.msra.mxu0 0.0
    %199 = vmatprep.subr.mxu0 0.0
    %200 = vmatpush1.xpose.msra.mxu0 0.0
    %201 = vmatprep.subr.mxu0 0.0
    %202 = vmatpush1.xpose.msra.mxu0 0.0
    %203 = vmatprep.subr.mxu0 0.0
    %204 = vmatpush1.xpose.msra.mxu0 0.0
    %205 = vmatprep.subr.mxu0 0.0
    %206 = vmatpush1.xpose.msra.mxu0 0.0
    %207 = vmatprep.subr.mxu0 0.0
    %208 = vmatpush1.xpose.msra.mxu0 0.0
    %209 = vmatprep.subr.mxu0 0.0
    %210 = vmatpush1.xpose.msra.mxu0 0.0
    %211 = vmatprep.subr.mxu0 0.0
    %212 = vmatpush1.xpose.msra.mxu0 0.0
    %213 = vmatprep.subr.mxu0 0.0
    %214 = vmatpush1.xpose.msra.mxu0 0.0
    %215 = vmatprep.subr.mxu0 0.0
    %216 = vmatpush1.xpose.msra.mxu0 0.0
    %217 = vmatprep.subr.mxu0 0.0
    %218 = vmatpush1.xpose.msra.mxu0 0.0
    %219 = vmatprep.subr.mxu0 0.0
    %220 = vmatpush1.xpose.msra.mxu0 0.0
    %221 = vmatprep.subr.mxu0 0.0
    %222 = vmatpush1.xpose.msra.mxu0 0.0
    %223 = vmatprep.subr.mxu0 0.0
    %224 = vmatpush1.xpose.msra.mxu0 0.0
    %225 = vmatprep.subr.mxu0 0.0
    %226 = vmatpush1.xpose.msra.mxu0 0.0
    %227 = vmatprep.subr.mxu0 0.0
    %228 = vmatpush1.xpose.msra.mxu0 0.0
    %229 = vmatprep.subr.mxu0 0.0
    %230 = vmatpush1.xpose.msra.mxu0 0.0
    %231 = vmatprep.subr.mxu0 0.0
    %232 = vmatpush1.xpose.msra.mxu0 0.0
    %233 = vmatprep.subr.mxu0 0.0
    %234 = vmatpush1.xpose.msra.mxu0 0.0
    %235 = vmatprep.subr.mxu0 0.0
    %236 = vmatpush1.xpose.msra.mxu0 0.0
    %237 = vmatprep.subr.mxu0 0.0
    %238 = vmatpush1.xpose.msra.mxu0 0.0
    %239 = vmatprep.subr.mxu0 0.0
    %240 = vmatpush1.xpose.msra.mxu0 0.0
    %241 = vmatprep.subr.mxu0 0.0
    %242 = vmatpush1.xpose.msra.mxu0 0.0
    %243 = vmatprep.subr.mxu0 0.0
    %244 = vmatpush1.xpose.msra.mxu0 0.0
    %245 = vmatprep.subr.mxu0 0.0
    %246 = vmatpush1.xpose.msra.mxu0 0.0
    %247 = vmatprep.subr.mxu0 0.0
    %248 = vmatpush1.xpose.msra.mxu0 0.0
    %249 = vmatprep.subr.mxu0 0.0
    %250 = vmatpush1.xpose.msra.mxu0 0.0
    %251 = vmatprep.mubr.f32.mxu0 0.0
    %252 = vmatmul.mubr.f32.gmra.mrb[0].mxu0 %v179
    %v253 = vpop.f32.mrb[0].mxu0
    %v254 = vadd.f32 0.0, %v253
    %v255 = vpop.f32.mrb[0].mxu0
    %256 = vdwg.mxu0
    %v258 = vsel %vm74, %v177, 0
    %v261 = vsel %vm74, %v174, 0
    %v264 = vsel %vm74, %v175, 0
    %266 = vmatprep.subr.mxu0 0.0
    %267 = vmatpush1.xpose.msra.mxu0 %v261
    %268 = vmatprep.subr.mxu0 0.0
    %269 = vmatpush1.xpose.msra.mxu0 %v264
    %270 = vmatprep.subr.mxu0 0.0
    %271 = vmatpush1.xpose.msra.mxu0 0.0
    %272 = vmatprep.subr.mxu0 0.0
    %273 = vmatpush1.xpose.msra.mxu0 0.0
    %274 = vmatprep.subr.mxu0 0.0
    %275 = vmatpush1.xpose.msra.mxu0 0.0
    %276 = vmatprep.subr.mxu0 0.0
    %277 = vmatpush1.xpose.msra.mxu0 0.0
    %278 = vmatprep.subr.mxu0 0.0
    %279 = vmatpush1.xpose.msra.mxu0 0.0
    %280 = vmatprep.subr.mxu0 0.0
    %281 = vmatpush1.xpose.msra.mxu0 0.0
    %282 = vmatprep.subr.mxu0 0.0
    %283 = vmatpush1.xpose.msra.mxu0 0.0
    %284 = vmatprep.subr.mxu0 0.0
    %285 = vmatpush1.xpose.msra.mxu0 0.0
    %286 = vmatprep.subr.mxu0 0.0
    %287 = vmatpush1.xpose.msra.mxu0 0.0
    %288 = vmatprep.subr.mxu0 0.0
    %289 = vmatpush1.xpose.msra.mxu0 0.0
    %290 = vmatprep.subr.mxu0 0.0
    %291 = vmatpush1.xpose.msra.mxu0 0.0
    %292 = vmatprep.subr.mxu0 0.0
    %293 = vmatpush1.xpose.msra.mxu0 0.0
    %294 = vmatprep.subr.mxu0 0.0
    %295 = vmatpush1.xpose.msra.mxu0 0.0
    %296 = vmatprep.subr.mxu0 0.0
    %297 = vmatpush1.xpose.msra.mxu0 0.0
    %298 = vmatprep.subr.mxu0 0.0
    %299 = vmatpush1.xpose.msra.mxu0 0.0
    %300 = vmatprep.subr.mxu0 0.0
    %301 = vmatpush1.xpose.msra.mxu0 0.0
    %302 = vmatprep.subr.mxu0 0.0
    %303 = vmatpush1.xpose.msra.mxu0 0.0
    %304 = vmatprep.subr.mxu0 0.0
    %305 = vmatpush1.xpose.msra.mxu0 0.0
    %306 = vmatprep.subr.mxu0 0.0
    %307 = vmatpush1.xpose.msra.mxu0 0.0
    %308 = vmatprep.subr.mxu0 0.0
    %309 = vmatpush1.xpose.msra.mxu0 0.0
    %310 = vmatprep.subr.mxu0 0.0
    %311 = vmatpush1.xpose.msra.mxu0 0.0
    %312 = vmatprep.subr.mxu0 0.0
    %313 = vmatpush1.xpose.msra.mxu0 0.0
    %314 = vmatprep.subr.mxu0 0.0
    %315 = vmatpush1.xpose.msra.mxu0 0.0
    %316 = vmatprep.subr.mxu0 0.0
    %317 = vmatpush1.xpose.msra.mxu0 0.0
    %318 = vmatprep.subr.mxu0 0.0
    %319 = vmatpush1.xpose.msra.mxu0 0.0
    %320 = vmatprep.subr.mxu0 0.0
    %321 = vmatpush1.xpose.msra.mxu0 0.0
    %322 = vmatprep.subr.mxu0 0.0
    %323 = vmatpush1.xpose.msra.mxu0 0.0
    %324 = vmatprep.subr.mxu0 0.0
    %325 = vmatpush1.xpose.msra.mxu0 0.0
    %326 = vmatprep.subr.mxu0 0.0
    %327 = vmatpush1.xpose.msra.mxu0 0.0
    %328 = vmatprep.subr.mxu0 0.0
    %329 = vmatpush1.xpose.msra.mxu0 0.0
    %330 = vmatprep.mubr.f32.mxu0 0.0
    %331 = vmatmul.mubr.f32.gmra.mrb[0].mxu0 %v258
    %v332 = vpop.f32.mrb[0].mxu0
    %v333 = vadd.f32 0.0, %v332
    %v334 = vpop.f32.mrb[0].mxu0
    %335 = vdwg.mxu0
    %v336 = vmul.f32 %v254, 0.17677669
    %v337 = vmul.f32 %v333, 0.17677669
    %v338 = vld [vmem:[%s4] sm:$0x1]
    %v339 = vld [vmem:[%s4 + $0x1] sm:$0x1]
    %vm340 = vcmp.eq.s32.totalorder %v338, 0
    %vm341 = vcmp.eq.s32.totalorder %v339, 0
    %v342 = vsel %vm340, 1, 0
    %v343 = vsel %vm341, 1, 0
    %v344 = vlaneseq
    %v345 = vshrl.u32 %v344, 7
    %v346 = vsub.s32 0, %v345
    %v347 = vrot.slane %v342, %v346
    %v348 = vlaneseq
    %v349 = vshrl.u32 %v348, 7
    %v350 = vsub.s32 0, %v349
    %v351 = vrot.slane %v343, %v350
    %vm352 = vcmp.eq.s32.totalorder %v347, 1
    %vm353 = vcmp.eq.s32.totalorder %v351, 1
    %v354 = vsel %vm352, -1e+09, %v336
    %v355 = vsel %vm353, -1e+09, %v337
    %vm356 = vcmask 130048
    %v357 = vsel %vm356, %v354, -inf
    %358 = vmax.xlane.f32.xlu0 %v357
    %v359 = vpop.xlane.xlu0 %358
    %v360 = vsel %vm356, %v355, -inf
    %361 = vmax.xlane.f32.xlu0 %v360
    %v362 = vpop.xlane.xlu0 %361
    %v363 = vsub.f32 %v354, %v359
    %v364 = vsub.f32 %v355, %v362
    %v365 = vmul.f32 %v363, 1.442695
    %v366 = vpow.pop %v365
    %v367 = vmul.f32 %v364, 1.442695
    %v368 = vpow.pop %v367
    %v369 = vsel %vm356, %v366, 0.0
    %370 = vadd.xlane.f32.xlu0 %v369
    %v371 = vpop.xlane.xlu0 %370
    %v372 = vsel %vm356, %v368, 0.0
    %373 = vadd.xlane.f32.xlu0 %v372
    %v374 = vpop.xlane.xlu0 %373
    %v375 = vrcp.pop %v371
    %v376 = vrcp.pop %v374
    %v377 = vmul.f32 %v366, %v375
    %v378 = vmul.f32 %v368, %v376
    %379 = vst.msk [vmem:[#allocation9] sm:$0xff] %vm356, %v377
    %380 = vst.msk [vmem:[#allocation9 + $0x8] sm:$0xff] %vm356, %v378
    %v381 = vld [vmem:[#allocation5] sm:$0xff]
    %v382 = vld [vmem:[#allocation5 + $0x8] sm:$0xff]
    %v383 = vld [vmem:[#allocation5 + $0x10] sm:$0xff]
    %v384 = vld [vmem:[#allocation5 + $0x18] sm:$0xff]
    %v386 = vsel %vm356, %v377, 0
    %388 = vmatprep.subr.mxu0 0.0
    %389 = vmatpush1.msra.mxu0 %v381
    %390 = vmatprep.subr.mxu0 0.0
    %391 = vmatpush1.msra.mxu0 %v382
    %392 = vmatprep.subr.mxu0 0.0
    %393 = vmatpush1.msra.mxu0 0.0
    %394 = vmatprep.subr.mxu0 0.0
    %395 = vmatpush1.msra.mxu0 0.0
    %396 = vmatprep.subr.mxu0 0.0
    %397 = vmatpush1.msra.mxu0 0.0
    %398 = vmatprep.subr.mxu0 0.0
    %399 = vmatpush1.msra.mxu0 0.0
    %400 = vmatprep.subr.mxu0 0.0
    %401 = vmatpush1.msra.mxu0 0.0
    %402 = vmatprep.subr.mxu0 0.0
    %403 = vmatpush1.msra.mxu0 0.0
    %404 = vmatprep.subr.mxu0 0.0
    %405 = vmatpush1.msra.mxu0 0.0
    %406 = vmatprep.subr.mxu0 0.0
    %407 = vmatpush1.msra.mxu0 0.0
    %408 = vmatprep.subr.mxu0 0.0
    %409 = vmatpush1.msra.mxu0 0.0
    %410 = vmatprep.subr.mxu0 0.0
    %411 = vmatpush1.msra.mxu0 0.0
    %412 = vmatprep.subr.mxu0 0.0
    %413 = vmatpush1.msra.mxu0 0.0
    %414 = vmatprep.subr.mxu0 0.0
    %415 = vmatpush1.msra.mxu0 0.0
    %416 = vmatprep.subr.mxu0 0.0
    %417 = vmatpush1.msra.mxu0 0.0
    %418 = vmatprep.subr.mxu0 0.0
    %419 = vmatpush1.msra.mxu0 0.0
    %420 = vmatprep.subr.mxu0 0.0
    %421 = vmatpush1.msra.mxu0 0.0
    %422 = vmatprep.subr.mxu0 0.0
    %423 = vmatpush1.msra.mxu0 0.0
    %424 = vmatprep.subr.mxu0 0.0
    %425 = vmatpush1.msra.mxu0 0.0
    %426 = vmatprep.subr.mxu0 0.0
    %427 = vmatpush1.msra.mxu0 0.0
    %428 = vmatprep.subr.mxu0 0.0
    %429 = vmatpush1.msra.mxu0 0.0
    %430 = vmatprep.subr.mxu0 0.0
    %431 = vmatpush1.msra.mxu0 0.0
    %432 = vmatprep.subr.mxu0 0.0
    %433 = vmatpush1.msra.mxu0 0.0
    %434 = vmatprep.subr.mxu0 0.0
    %435 = vmatpush1.msra.mxu0 0.0
    %436 = vmatprep.subr.mxu0 0.0
    %437 = vmatpush1.msra.mxu0 0.0
    %438 = vmatprep.subr.mxu0 0.0
    %439 = vmatpush1.msra.mxu0 0.0
    %440 = vmatprep.subr.mxu0 0.0
    %441 = vmatpush1.msra.mxu0 0.0
    %442 = vmatprep.subr.mxu0 0.0
    %443 = vmatpush1.msra.mxu0 0.0
    %444 = vmatprep.subr.mxu0 0.0
    %445 = vmatpush1.msra.mxu0 0.0
    %446 = vmatprep.subr.mxu0 0.0
    %447 = vmatpush1.msra.mxu0 0.0
    %448 = vmatprep.subr.mxu0 0.0
    %449 = vmatpush1.msra.mxu0 0.0
    %450 = vmatprep.subr.mxu0 0.0
    %451 = vmatpush1.msra.mxu0 0.0
    %452 = vmatprep.mubr.f32.mxu0 0.0
    %453 = vmatmul.mubr.f32.gmra.mrb[0].mxu0 %v386
    %v454 = vpop.f32.mrb[0].mxu0
    %v455 = vadd.f32 0.0, %v454
    %v456 = vpop.f32.mrb[0].mxu0
    %457 = vdwg.mxu0
    %v459 = vsel %vm356, %v378, 0
    %461 = vmatprep.subr.mxu0 0.0
    %462 = vmatpush1.msra.mxu0 %v383
    %463 = vmatprep.subr.mxu0 0.0
    %464 = vmatpush1.msra.mxu0 %v384
    %465 = vmatprep.subr.mxu0 0.0
    %466 = vmatpush1.msra.mxu0 0.0
    %467 = vmatprep.subr.mxu0 0.0
    %468 = vmatpush1.msra.mxu0 0.0
    %469 = vmatprep.subr.mxu0 0.0
    %470 = vmatpush1.msra.mxu0 0.0
    %471 = vmatprep.subr.mxu0 0.0
    %472 = vmatpush1.msra.mxu0 0.0
    %473 = vmatprep.subr.mxu0 0.0
    %474 = vmatpush1.msra.mxu0 0.0
    %475 = vmatprep.subr.mxu0 0.0
    %476 = vmatpush1.msra.mxu0 0.0
    %477 = vmatprep.subr.mxu0 0.0
    %478 = vmatpush1.msra.mxu0 0.0
    %479 = vmatprep.subr.mxu0 0.0
    %480 = vmatpush1.msra.mxu0 0.0
    %481 = vmatprep.subr.mxu0 0.0
    %482 = vmatpush1.msra.mxu0 0.0
    %483 = vmatprep.subr.mxu0 0.0
    %484 = vmatpush1.msra.mxu0 0.0
    %485 = vmatprep.subr.mxu0 0.0
    %486 = vmatpush1.msra.mxu0 0.0
    %487 = vmatprep.subr.mxu0 0.0
    %488 = vmatpush1.msra.mxu0 0.0
    %489 = vmatprep.subr.mxu0 0.0
    %490 = vmatpush1.msra.mxu0 0.0
    %491 = vmatprep.subr.mxu0 0.0
    %492 = vmatpush1.msra.mxu0 0.0
    %493 = vmatprep.subr.mxu0 0.0
    %494 = vmatpush1.msra.mxu0 0.0
    %495 = vmatprep.subr.mxu0 0.0
    %496 = vmatpush1.msra.mxu0 0.0
    %497 = vmatprep.subr.mxu0 0.0
    %498 = vmatpush1.msra.mxu0 0.0
    %499 = vmatprep.subr.mxu0 0.0
    %500 = vmatpush1.msra.mxu0 0.0
    %501 = vmatprep.subr.mxu0 0.0
    %502 = vmatpush1.msra.mxu0 0.0
    %503 = vmatprep.subr.mxu0 0.0
    %504 = vmatpush1.msra.mxu0 0.0
    %505 = vmatprep.subr.mxu0 0.0
    %506 = vmatpush1.msra.mxu0 0.0
    %507 = vmatprep.subr.mxu0 0.0
    %508 = vmatpush1.msra.mxu0 0.0
    %509 = vmatprep.subr.mxu0 0.0
    %510 = vmatpush1.msra.mxu0 0.0
    %511 = vmatprep.subr.mxu0 0.0
    %512 = vmatpush1.msra.mxu0 0.0
    %513 = vmatprep.subr.mxu0 0.0
    %514 = vmatpush1.msra.mxu0 0.0
    %515 = vmatprep.subr.mxu0 0.0
    %516 = vmatpush1.msra.mxu0 0.0
    %517 = vmatprep.subr.mxu0 0.0
    %518 = vmatpush1.msra.mxu0 0.0
    %519 = vmatprep.subr.mxu0 0.0
    %520 = vmatpush1.msra.mxu0 0.0
    %521 = vmatprep.subr.mxu0 0.0
    %522 = vmatpush1.msra.mxu0 0.0
    %523 = vmatprep.subr.mxu0 0.0
    %524 = vmatpush1.msra.mxu0 0.0
    %525 = vmatprep.mubr.f32.mxu0 0.0
    %526 = vmatmul.mubr.f32.gmra.mrb[0].mxu0 %v459
    %v527 = vpop.f32.mrb[0].mxu0
    %v528 = vadd.f32 0.0, %v527
    %v529 = vpop.f32.mrb[0].mxu0
    %530 = vdwg.mxu0
    %531 = vst.msk [vmem:[#allocation8] sm:$0xff] %vm74, %v455
    %532 = vst.msk [vmem:[#allocation8 + $0x8] sm:$0xff] %vm74, %v528
    %533 = vmatprep.subr.mxu0 0.0
    %534 = vmatpush1.xpose.msra.mxu0 %v386
    %535 = vmatprep.subr.mxu0 0.0
    %536 = vmatpush1.xpose.msra.mxu0 0.0
    %537 = vmatprep.subr.mxu0 0.0
    %538 = vmatpush1.xpose.msra.mxu0 0.0
    %539 = vmatprep.subr.mxu0 0.0
    %540 = vmatpush1.xpose.msra.mxu0 0.0
    %541 = vmatprep.subr.mxu0 0.0
    %542 = vmatpush1.xpose.msra.mxu0 0.0
    %543 = vmatprep.subr.mxu0 0.0
    %544 = vmatpush1.xpose.msra.mxu0 0.0
    %545 = vmatprep.subr.mxu0 0.0
    %546 = vmatpush1.xpose.msra.mxu0 0.0
    %547 = vmatprep.subr.mxu0 0.0
    %548 = vmatpush1.xpose.msra.mxu0 0.0
    %549 = vmatprep.subr.mxu0 0.0
    %550 = vmatpush1.xpose.msra.mxu0 0.0
    %551 = vmatprep.subr.mxu0 0.0
    %552 = vmatpush1.xpose.msra.mxu0 0.0
    %553 = vmatprep.subr.mxu0 0.0
    %554 = vmatpush1.xpose.msra.mxu0 0.0
    %555 = vmatprep.subr.mxu0 0.0
    %556 = vmatpush1.xpose.msra.mxu0 0.0
    %557 = vmatprep.subr.mxu0 0.0
    %558 = vmatpush1.xpose.msra.mxu0 0.0
    %559 = vmatprep.subr.mxu0 0.0
    %560 = vmatpush1.xpose.msra.mxu0 0.0
    %561 = vmatprep.subr.mxu0 0.0
    %562 = vmatpush1.xpose.msra.mxu0 0.0
    %563 = vmatprep.subr.mxu0 0.0
    %564 = vmatpush1.xpose.msra.mxu0 0.0
    %565 = vmatprep.subr.mxu0 0.0
    %566 = vmatpush1.xpose.msra.mxu0 0.0
    %567 = vmatprep.subr.mxu0 0.0
    %568 = vmatpush1.xpose.msra.mxu0 0.0
    %569 = vmatprep.subr.mxu0 0.0
    %570 = vmatpush1.xpose.msra.mxu0 0.0
    %571 = vmatprep.subr.mxu0 0.0
    %572 = vmatpush1.xpose.msra.mxu0 0.0
    %573 = vmatprep.subr.mxu0 0.0
    %574 = vmatpush1.xpose.msra.mxu0 0.0
    %575 = vmatprep.subr.mxu0 0.0
    %576 = vmatpush1.xpose.msra.mxu0 0.0
    %577 = vmatprep.subr.mxu0 0.0
    %578 = vmatpush1.xpose.msra.mxu0 0.0
    %579 = vmatprep.subr.mxu0 0.0
    %580 = vmatpush1.xpose.msra.mxu0 0.0
    %581 = vmatprep.subr.mxu0 0.0
    %582 = vmatpush1.xpose.msra.mxu0 0.0
    %583 = vmatprep.subr.mxu0 0.0
    %584 = vmatpush1.xpose.msra.mxu0 0.0
    %585 = vmatprep.subr.mxu0 0.0
    %586 = vmatpush1.xpose.msra.mxu0 0.0
    %587 = vmatprep.subr.mxu0 0.0
    %588 = vmatpush1.xpose.msra.mxu0 0.0
    %589 = vmatprep.subr.mxu0 0.0
    %590 = vmatpush1.xpose.msra.mxu0 0.0
    %591 = vmatprep.subr.mxu0 0.0
    %592 = vmatpush1.xpose.msra.mxu0 0.0
    %593 = vmatprep.subr.mxu0 0.0
    %594 = vmatpush1.xpose.msra.mxu0 0.0
    %595 = vmatprep.subr.mxu0 0.0
    %596 = vmatpush1.xpose.msra.mxu0 0.0
    %597 = vmatprep.mubr.f32.mxu0 0.0
    %598 = vmatmul.mubr.f32.gmra.mrb[0].mxu0 %v386
    %v599 = vpop.f32.mrb[0].mxu0
    %v600 = vadd.f32 0.0, %v599
    %v601 = vpop.f32.mrb[0].mxu0
    %602 = vdwg.mxu0
    %603 = vmatprep.subr.mxu0 0.0
    %604 = vmatpush1.xpose.msra.mxu0 %v459
    %605 = vmatprep.subr.mxu0 0.0
    %606 = vmatpush1.xpose.msra.mxu0 0.0
    %607 = vmatprep.subr.mxu0 0.0
    %608 = vmatpush1.xpose.msra.mxu0 0.0
    %609 = vmatprep.subr.mxu0 0.0
    %610 = vmatpush1.xpose.msra.mxu0 0.0
    %611 = vmatprep.subr.mxu0 0.0
    %612 = vmatpush1.xpose.msra.mxu0 0.0
    %613 = vmatprep.subr.mxu0 0.0
    %614 = vmatpush1.xpose.msra.mxu0 0.0
    %615 = vmatprep.subr.mxu0 0.0
    %616 = vmatpush1.xpose.msra.mxu0 0.0
    %617 = vmatprep.subr.mxu0 0.0
    %618 = vmatpush1.xpose.msra.mxu0 0.0
    %619 = vmatprep.subr.mxu0 0.0
    %620 = vmatpush1.xpose.msra.mxu0 0.0
    %621 = vmatprep.subr.mxu0 0.0
    %622 = vmatpush1.xpose.msra.mxu0 0.0
    %623 = vmatprep.subr.mxu0 0.0
    %624 = vmatpush1.xpose.msra.mxu0 0.0
    %625 = vmatprep.subr.mxu0 0.0
    %626 = vmatpush1.xpose.msra.mxu0 0.0
    %627 = vmatprep.subr.mxu0 0.0
    %628 = vmatpush1.xpose.msra.mxu0 0.0
    %629 = vmatprep.subr.mxu0 0.0
    %630 = vmatpush1.xpose.msra.mxu0 0.0
    %631 = vmatprep.subr.mxu0 0.0
    %632 = vmatpush1.xpose.msra.mxu0 0.0
    %633 = vmatprep.subr.mxu0 0.0
    %634 = vmatpush1.xpose.msra.mxu0 0.0
    %635 = vmatprep.subr.mxu0 0.0
    %636 = vmatpush1.xpose.msra.mxu0 0.0
    %637 = vmatprep.subr.mxu0 0.0
    %638 = vmatpush1.xpose.msra.mxu0 0.0
    %639 = vmatprep.subr.mxu0 0.0
    %640 = vmatpush1.xpose.msra.mxu0 0.0
    %641 = vmatprep.subr.mxu0 0.0
    %642 = vmatpush1.xpose.msra.mxu0 0.0
    %643 = vmatprep.subr.mxu0 0.0
    %644 = vmatpush1.xpose.msra.mxu0 0.0
    %645 = vmatprep.subr.mxu0 0.0
    %646 = vmatpush1.xpose.msra.mxu0 0.0
    %647 = vmatprep.subr.mxu0 0.0
    %648 = vmatpush1.xpose.msra.mxu0 0.0
    %649 = vmatprep.subr.mxu0 0.0
    %650 = vmatpush1.xpose.msra.mxu0 0.0
    %651 = vmatprep.subr.mxu0 0.0
    %652 = vmatpush1.xpose.msra.mxu0 0.0
    %653 = vmatprep.subr.mxu0 0.0
    %654 = vmatpush1.xpose.msra.mxu0 0.0
    %655 = vmatprep.subr.mxu0 0.0
    %656 = vmatpush1.xpose.msra.mxu0 0.0
    %657 = vmatprep.subr.mxu0 0.0
    %658 = vmatpush1.xpose.msra.mxu0 0.0
    %659 = vmatprep.subr.mxu0 0.0
    %660 = vmatpush1.xpose.msra.mxu0 0.0
    %661 = vmatprep.subr.mxu0 0.0
    %662 = vmatpush1.xpose.msra.mxu0 0.0
    %663 = vmatprep.subr.mxu0 0.0
    %664 = vmatpush1.xpose.msra.mxu0 0.0
    %665 = vmatprep.subr.mxu0 0.0
    %666 = vmatpush1.xpose.msra.mxu0 0.0
    %667 = vmatprep.mubr.f32.mxu0 0.0
    %668 = vmatmul.mubr.f32.gmra.mrb[0].mxu0 %v459
    %v669 = vpop.f32.mrb[0].mxu0
    %v670 = vadd.f32 0.0, %v669
    %v671 = vpop.f32.mrb[0].mxu0
    %672 = vdwg.mxu0
    %v673 = vmul.f32 %v600, %v600
    %v674 = vmul.f32 %v670, %v670
    %vm675 = vcmask 64512
    %v676 = vsel %vm675, %v673, 0.0
    %677 = vadd.xlane.f32.xlu0 %v676
    %v678 = vpop.xlane.xlu0 %677
    %v679 = vsel %vm675, %v674, 0.0
    %680 = vadd.xlane.f32.xlu0 %v679
    %v681 = vpop.xlane.xlu0 %680
    %v682 = vrot.slane %v678, 4
    %v683 = vadd.f32 %v678, %v682
    %v684 = vrot.slane %v683, 2
    %v685 = vadd.f32 %v683, %v684
    %v686 = vrot.slane %v685, 1
    %v687 = vadd.f32 %v685, %v686
    %v688 = vrot.slane %v681, 4
    %v689 = vadd.f32 %v681, %v688
    %v690 = vrot.slane %v689, 2
    %v691 = vadd.f32 %v689, %v690
    %v692 = vrot.slane %v691, 1
    %v693 = vadd.f32 %v691, %v692
    %v694 = vmul.f32 %v377, %v377
    %v695 = vmul.f32 %v378, %v378
    %v696 = vsel %vm356, %v694, 0.0
    %697 = vadd.xlane.f32.xlu0 %v696
    %v698 = vpop.xlane.xlu0 %697
    %v699 = vsel %vm356, %v695, 0.0
    %700 = vadd.xlane.f32.xlu0 %v699
    %v701 = vpop.xlane.xlu0 %700
    %v702 = vrot.slane %v698, 4
    %v703 = vadd.f32 %v698, %v702
    %v704 = vrot.slane %v703, 2
    %v705 = vadd.f32 %v703, %v704
    %v706 = vrot.slane %v705, 1
    %v707 = vadd.f32 %v705, %v706
    %v708 = vrot.slane %v701, 4
    %v709 = vadd.f32 %v701, %v708
    %v710 = vrot.slane %v709, 2
    %v711 = vadd.f32 %v709, %v710
    %v712 = vrot.slane %v711, 1
    %v713 = vadd.f32 %v711, %v712
    %v714 = vmul.f32 %v707, 2.0
    %v715 = vmul.f32 %v713, 2.0
    %v716 = vsub.f32 %v687, %v714
    %v717 = vsub.f32 %v693, %v715
    %v718 = vadd.f32 %v716, 8.0
    %v719 = vadd.f32 %v717, 8.0
    %vm720 = vcmask 0
    %721 = vst.msk [vmem:[%s7] sm:$0x1] %vm720, %v718
    %722 = vst.msk [vmem:[%s7 + $0x1] sm:$0x1] %vm720, %v719
    // Predicated region
    $region34: #{structured_attention.1} parent=1 // pred_check
      _
    $region35: #{structured_attention.1} parent=1 // pred_check_branch
      %724 = sbr.rel (0) target = $region37
    $region36: #{structured_attention.1} parent=1 // pred_region
      %s726 = ssub.s32 256, 256
      %727 = vsyncadd [#allocation4], %s726
      %s728 = sshll.u32 [#allocation8], 4
      %s729 = int_to_ptr.vmem [resolvable:$true] %s728
      %734 = dma.vmem_to_hbm [thread:$0]  %s729, 256, %s5, [#allocation4], 128, 128, 8
    $region37: #{structured_attention.1} parent=1 // pred_fallthru
      _
    // Predicated region
    $region38: #{structured_attention.1} parent=1 // pred_check
      _
    $region39: #{structured_attention.1} parent=1 // pred_check_branch
      %736 = sbr.rel (0) target = $region41
    $region40: #{structured_attention.1} parent=1 // pred_region
      %s738 = ssub.s32 256, 256
      %739 = vsyncadd [#allocation10], %s738
      %s740 = sshll.u32 [#allocation9], 4
      %s741 = int_to_ptr.vmem [resolvable:$true] %s740
      %746 = dma.vmem_to_hbm [thread:$0]  %s741, 256, %s6, [#allocation10], 128, 128, 8
    $region41: #{structured_attention.1} parent=1 // pred_fallthru
      _
    // Predicated region
    $region42: #{structured_attention.1} parent=1 // pred_check
      _
    $region43: #{structured_attention.1} parent=1 // pred_check_branch
      %748 = sbr.rel (0) target = $region45
    $region44: #{structured_attention.1} parent=1 // pred_region
      _
    $region45: #{structured_attention.1} parent=1 // pred_fallthru
      _
    // Predicated region
    $region46: #{structured_attention.1} parent=1 // pred_check
      _
    $region47: #{structured_attention.1} parent=1 // pred_check_branch
      %750 = sbr.rel (0) target = $region49
    $region48: #{structured_attention.1} parent=1 // pred_region
      %751 = dma.done [#allocation4], 256
    $region49: #{structured_attention.1} parent=1 // pred_fallthru
      _
    // Predicated region
    $region50: #{structured_attention.1} parent=1 // pred_check
      _
    $region51: #{structured_attention.1} parent=1 // pred_check_branch
      %753 = sbr.rel (0) target = $region53
    $region52: #{structured_attention.1} parent=1 // pred_region
      %754 = dma.done [#allocation10], 256
    $region53: #{structured_attention.1} parent=1 // pred_fallthru
      _
    // Predicated region
    $region54: #{structured_attention.1} parent=1 // pred_check
      _
    $region55: #{structured_attention.1} parent=1 // pred_check_branch
      %756 = sbr.rel (0) target = $region57
    $region56: #{structured_attention.1} parent=1 // pred_region
      _
    $region57: #{structured_attention.1} parent=1 // pred_fallthru
      _
    %757 = vsyncpa [#allocation3], 1
    %758 = vsyncpa [#allocation6], 1
    %759 = vsyncpa [#allocation4], 1
    %760 = vsyncpa [#allocation10], 1

</llo_original>
